<compile_context>
chip_gen: v6e
topology: v6e:2x2x1
jax: 0.10.0
libtpu: 0.0.40
codegen_flags: <defaults>
</compile_context>

<pallas_src>
import jax
import jax.numpy as jnp
from jax.experimental import pallas as pl
from jax.experimental.pallas import tpu as pltpu


def _attention_kernel(hidden_ref, enc_ref, wh_t_ref, we_t_ref, b_ref, v_ref,
                      out_ref):
    """One batch tile.

    hidden_ref: (TB, Ddec)
    enc_ref:    (S, TB, E2)     -- native PyTorch seq-major layout
    wh_t_ref:   (Ddec, Ddec)    == W_attn[:, :Ddec].T
    we_t_ref:   (E2,   Ddec)    == W_attn[:, Ddec:].T
    b_ref:      (1, Ddec)
    v_ref:      (1, Ddec)       == v.weight (out_features=1)
    out_ref:    (TB, S)
    """
    S, TB, E2 = enc_ref.shape
    Ddec = wh_t_ref.shape[0]

    # Hidden projection on the MXU: (TB, Ddec) @ (Ddec, Ddec) -> f32.
    hproj = jnp.dot(hidden_ref[...], wh_t_ref[...],
                    preferred_element_type=jnp.float32)

    enc = enc_ref[...]
    we_t = we_t_ref[...]
    if TB % 8 == 0:
        # Single tall 2-D MXU matmul: fills the systolic array's M dimension
        # instead of B tiny per-batch matmuls.
        eproj = jnp.dot(enc.reshape(S * TB, E2), we_t,
                        preferred_element_type=jnp.float32)
        eproj = eproj.reshape(S, TB, Ddec)
    else:
        # Non-sublane-aligned batch tile: keep the rank-3 contraction
        # (a minor-dim-unaligned reshape is not reliably lowerable).
        eproj = jnp.einsum("sbe,ed->sbd", enc, we_t,
                           preferred_element_type=jnp.float32)

    bias = b_ref[...].astype(jnp.float32)                       # (1, Ddec)
    # energy = tanh(attn(cat(hidden, enc)))  -- f32 epilogue (EUP tanh).
    energy = jnp.tanh(eproj + hproj[None, :, :] + bias[None, :, :])

    # v-projection: (S, TB, Ddec) -> (S, TB).  Kept as a VPU multiply + XLU
    # lane reduce (the MXU variant needs a minor-dim reshape of a (S*TB, 1)
    # result that Mosaic does not lower cleanly; MXU has slack here anyway).
    v_row = v_ref[...].astype(jnp.float32)                      # (1, Ddec)
    scores = jnp.sum(energy * v_row[None, :, :], axis=-1)       # (S, TB)

    # softmax over src_len; emit batch-major with S on the lane axis.
    scores_bm = scores.T                                        # (TB, S)
    m = jnp.max(scores_bm, axis=1, keepdims=True)
    e = jnp.exp(scores_bm - m)
    denom = jnp.sum(e, axis=1, keepdims=True)
    out_ref[...] = (e * pl.reciprocal(denom, approx=True)).astype(out_ref.dtype)


def _pick_batch_tile(batch, src_len, e2, itemsize, budget_bytes=8 << 20):
    """Largest sublane-aligned batch tile whose double-buffered encoder tile
    fits a conservative VMEM budget (stays under the 32 MiB scoped default on
    all generations, including v7x's smaller physical VMEM)."""
    candidates = [tb for tb in (512, 256, 128, 64, 32, 16, 8)
                  if batch % tb == 0]
    for tb in candidates:
        if 2 * tb * src_len * e2 * itemsize <= budget_bytes:
            return tb
    if candidates:
        return candidates[-1]
    # Small / oddly sized batch: a single full-batch block (a block dim equal
    # to the full array dim is always legal).
    return batch


def attention_pallas(hidden, encoder_outputs, w_attn, b_attn, v_weight,
                     *, batch_tile=None):
    """hidden: (B, Ddec); encoder_outputs: (S, B, 2*Denc) (PyTorch layout).

    w_attn: (Ddec, Ddec + 2*Denc)  -- nn.Linear(enc*2+dec, dec).weight
    b_attn: (Ddec,)
    v_weight: (1, Ddec)            -- nn.Linear(dec, 1, bias=False).weight
    Returns softmax attention weights: (B, S).
    """
    S, B, E2 = encoder_outputs.shape
    Ddec = hidden.shape[1]

    # Split the concat-Linear: concat order is (hidden, encoder_outputs).
    wh_t = jnp.transpose(w_attn[:, :Ddec])                  # (Ddec, Ddec)
    we_t = jnp.transpose(w_attn[:, Ddec:])                  # (E2, Ddec)
    b2 = b_attn.reshape(1, Ddec)
    v2 = v_weight.reshape(1, Ddec)

    itemsize = jnp.dtype(encoder_outputs.dtype).itemsize
    tb = batch_tile if batch_tile is not None else _pick_batch_tile(
        B, S, E2, itemsize)

    grid_spec = pltpu.PrefetchScalarGridSpec(
        num_scalar_prefetch=0,
        grid=(pl.cdiv(B, tb),),
        in_specs=[
            pl.BlockSpec((tb, Ddec), lambda i: (i, 0)),       # hidden tile
            pl.BlockSpec((S, tb, E2), lambda i: (0, i, 0)),   # enc tile (no HBM transpose)
            pl.BlockSpec((Ddec, Ddec), lambda i: (0, 0)),     # Wh^T (resident)
            pl.BlockSpec((E2, Ddec), lambda i: (0, 0)),       # We^T (resident)
            pl.BlockSpec((1, Ddec), lambda i: (0, 0)),        # bias (resident)
            pl.BlockSpec((1, Ddec), lambda i: (0, 0)),        # v    (resident)
        ],
        out_specs=pl.BlockSpec((tb, S), lambda i: (i, 0)),
    )

    return pl.pallas_call(
        _attention_kernel,
        out_shape=jax.ShapeDtypeStruct((B, S), jnp.float32),
        grid_spec=grid_spec,
        compiler_params=pltpu.CompilerParams(
            dimension_semantics=("parallel",)),
    )(hidden, encoder_outputs, wh_t, we_t, b2, v2)


def attention_reference(hidden, encoder_outputs, w_attn, b_attn, v_weight):
    """Pure-JAX transcription of the PyTorch forward (for verification)."""
    S, B, _ = encoder_outputs.shape
    hidden_rep = jnp.repeat(hidden[:, None, :], S, axis=1)          # (B, S, Ddec)
    enc_bm = jnp.transpose(encoder_outputs, (1, 0, 2))              # (B, S, E2)
    cat = jnp.concatenate([hidden_rep, enc_bm], axis=2)
    energy = jnp.tanh(cat @ w_attn.T + b_attn)
    attention = (energy @ v_weight.T)[..., 0]                       # (B, S)
    return jax.nn.softmax(attention, axis=1)


if __name__ == "__main__":
    # Small shapes consistent with the module's forward.
    batch = 16
    src_len = 8
    enc_hid_dim = 16
    dec_hid_dim = 32
    e2 = enc_hid_dim * 2

    key = jax.random.PRNGKey(0)
    k1, k2, k3, k4, k5 = jax.random.split(key, 5)

    hidden = jax.random.normal(k1, (batch, dec_hid_dim), dtype=jnp.float32)
    encoder_outputs = jax.random.normal(k2, (src_len, batch, e2),
                                        dtype=jnp.float32)

    # Deterministic synthetic parameters (nn.Linear shapes).
    w_attn = 0.1 * jax.random.normal(k3, (dec_hid_dim, e2 + dec_hid_dim),
                                     dtype=jnp.float32)
    b_attn = 0.1 * jax.random.normal(k4, (dec_hid_dim,), dtype=jnp.float32)
    v_weight = 0.1 * jax.random.normal(k5, (1, dec_hid_dim), dtype=jnp.float32)

    # batch_tile=8 -> grid=(2,): exercises the multi-block pipelined path.
    out = attention_pallas(hidden, encoder_outputs, w_attn, b_attn, v_weight,
                           batch_tile=8)
    out = jax.block_until_ready(out)

    ref = attention_reference(hidden, encoder_outputs, w_attn, b_attn, v_weight)
    assert out.shape == (batch, src_len)
    # approx reciprocal in the softmax normalization -> ~1e-4 relative error
    assert jnp.allclose(out, ref, atol=1e-3, rtol=1e-3), "mismatch vs reference"
    assert jnp.allclose(jnp.sum(out, axis=1), 1.0, atol=3e-3)

    print("KERNEL_OK")
</pallas_src>

<mosaic_0001>
module attributes {stable_mosaic.version = 11 : i64} {
  func.func @_attention_kernel(%arg0: i32, %arg1: memref<8x32xf32, #tpu.memory_space<vmem>>, %arg2: memref<8x8x32xf32, #tpu.memory_space<vmem>>, %arg3: memref<32x32xf32, #tpu.memory_space<vmem>>, %arg4: memref<32x32xf32, #tpu.memory_space<vmem>>, %arg5: memref<1x32xf32, #tpu.memory_space<vmem>>, %arg6: memref<1x32xf32, #tpu.memory_space<vmem>>, %arg7: memref<8x8xf32, #tpu.memory_space<vmem>>) attributes {dimension_semantics = [#tpu.dimension_semantics<parallel>], iteration_bounds = array<i64: 2>, scalar_prefetch = 0 : i64, scratch_operands = 0 : i64, tpu.core_type = #tpu.core_type<tc>, window_params = [{transform_indices = @transform_0, window_bounds = array<i64: 8, 32>}, {transform_indices = @transform_1, window_bounds = array<i64: 8, 8, 32>}, {pipeline_mode = #tpu.pipeline_mode<synchronous>, transform_indices = @transform_2, window_bounds = array<i64: 32, 32>}, {pipeline_mode = #tpu.pipeline_mode<synchronous>, transform_indices = @transform_3, window_bounds = array<i64: 32, 32>}, {pipeline_mode = #tpu.pipeline_mode<synchronous>, transform_indices = @transform_4, window_bounds = array<i64: 1, 32>}, {pipeline_mode = #tpu.pipeline_mode<synchronous>, transform_indices = @transform_5, window_bounds = array<i64: 1, 32>}, {transform_indices = @transform_6, window_bounds = array<i64: 8, 8>}]} {
    %c0 = arith.constant 0 : index
    %c0_0 = arith.constant 0 : index
    %0 = vector.load %arg1[%c0, %c0_0] : memref<8x32xf32, #tpu.memory_space<vmem>>, vector<8x32xf32>
    %c0_1 = arith.constant 0 : index
    %c0_2 = arith.constant 0 : index
    %1 = vector.load %arg3[%c0_1, %c0_2] : memref<32x32xf32, #tpu.memory_space<vmem>>, vector<32x32xf32>
    %cst = arith.constant dense<0.000000e+00> : vector<8x32xf32>
    %2 = tpu.matmul %0, %1, %cst {dimension_numbers = #tpu.dot_dimension_numbers<[1], [0], [0], [1], [0, 0, 1, 1], [], []>} : vector<8x32xf32>, vector<32x32xf32>, vector<8x32xf32> -> vector<8x32xf32>
    %c0_3 = arith.constant 0 : index
    %c0_4 = arith.constant 0 : index
    %c0_5 = arith.constant 0 : index
    %3 = vector.load %arg2[%c0_3, %c0_4, %c0_5] : memref<8x8x32xf32, #tpu.memory_space<vmem>>, vector<8x8x32xf32>
    %c0_6 = arith.constant 0 : index
    %c0_7 = arith.constant 0 : index
    %4 = vector.load %arg4[%c0_6, %c0_7] : memref<32x32xf32, #tpu.memory_space<vmem>>, vector<32x32xf32>
    %5 = vector.shape_cast %3 : vector<8x8x32xf32> to vector<64x32xf32>
    %cst_8 = arith.constant dense<0.000000e+00> : vector<64x32xf32>
    %6 = tpu.matmul %5, %4, %cst_8 {dimension_numbers = #tpu.dot_dimension_numbers<[1], [0], [0], [1], [0, 0, 1, 1], [], []>} : vector<64x32xf32>, vector<32x32xf32>, vector<64x32xf32> -> vector<64x32xf32>
    %7 = vector.shape_cast %6 : vector<64x32xf32> to vector<8x8x32xf32>
    %c0_9 = arith.constant 0 : index
    %c0_10 = arith.constant 0 : index
    %8 = vector.load %arg5[%c0_9, %c0_10] : memref<1x32xf32, #tpu.memory_space<vmem>>, vector<1x32xf32>
    %9 = vector.shape_cast %2 : vector<8x32xf32> to vector<1x8x32xf32>
    %10 = vector.broadcast %9 : vector<1x8x32xf32> to vector<8x8x32xf32>
    %11 = arith.addf %7, %10 : vector<8x8x32xf32>
    %12 = vector.shape_cast %8 : vector<1x32xf32> to vector<1x1x32xf32>
    %13 = vector.broadcast %12 : vector<1x1x32xf32> to vector<8x8x32xf32>
    %14 = arith.addf %11, %13 : vector<8x8x32xf32>
    %15 = math.tanh %14 : vector<8x8x32xf32>
    %c0_11 = arith.constant 0 : index
    %c0_12 = arith.constant 0 : index
    %16 = vector.load %arg6[%c0_11, %c0_12] : memref<1x32xf32, #tpu.memory_space<vmem>>, vector<1x32xf32>
    %17 = vector.shape_cast %16 : vector<1x32xf32> to vector<1x1x32xf32>
    %18 = vector.broadcast %17 : vector<1x1x32xf32> to vector<8x8x32xf32>
    %19 = arith.mulf %15, %18 : vector<8x8x32xf32>
    %cst_13 = arith.constant dense<0.000000e+00> : vector<8x8xf32>
    %20 = vector.multi_reduction <add>, %19, %cst_13 [2] : vector<8x8x32xf32> to vector<8x8xf32>
    %21 = tpu.transpose %20, [1, 0] : vector<8x8xf32> -> vector<8x8xf32>
    %cst_14 = arith.constant dense<0xFF800000> : vector<8xf32>
    %22 = vector.multi_reduction <maximumf>, %21, %cst_14 [1] : vector<8x8xf32> to vector<8xf32>
    %23 = vector.shape_cast %22 : vector<8xf32> to vector<8x1xf32>
    %24 = vector.broadcast %23 : vector<8x1xf32> to vector<8x8xf32>
    %25 = arith.subf %21, %24 : vector<8x8xf32>
    %26 = math.exp %25 : vector<8x8xf32>
    %cst_15 = arith.constant dense<0.000000e+00> : vector<8xf32>
    %27 = vector.multi_reduction <add>, %26, %cst_15 [1] : vector<8x8xf32> to vector<8xf32>
    %28 = vector.shape_cast %27 : vector<8xf32> to vector<8x1xf32>
    %29 = tpu.reciprocal %28 {approx = true} : vector<8x1xf32> -> vector<8x1xf32>
    %30 = vector.broadcast %29 : vector<8x1xf32> to vector<8x8xf32>
    %31 = arith.mulf %26, %30 : vector<8x8xf32>
    %c0_16 = arith.constant 0 : index
    %c0_17 = arith.constant 0 : index
    %32 = vector.load %arg7[%c0_16, %c0_17] : memref<8x8xf32, #tpu.memory_space<vmem>>, vector<8x8xf32>
    tpu.vector_store %arg7[%c0_16, %c0_17], %31 {strides = array<i32>} : memref<8x8xf32, #tpu.memory_space<vmem>>, vector<8x8xf32>,
    return
  }
  func.func @transform_0(%arg0: i32) -> (i32, i32) {
    %c0_i32 = arith.constant 0 : i32
    %c0_i32_0 = arith.constant 0 : i32
    return %arg0, %c0_i32 : i32, i32
  }
  func.func @transform_1(%arg0: i32) -> (i32, i32, i32) {
    %c0_i32 = arith.constant 0 : i32
    %c0_i32_0 = arith.constant 0 : i32
    %c0_i32_1 = arith.constant 0 : i32
    return %c0_i32, %arg0, %c0_i32_0 : i32, i32, i32
  }
  func.func @transform_2(%arg0: i32) -> (i32, i32) {
    %c0_i32 = arith.constant 0 : i32
    %c0_i32_0 = arith.constant 0 : i32
    %c0_i32_1 = arith.constant 0 : i32
    return %c0_i32, %c0_i32_0 : i32, i32
  }
  func.func @transform_3(%arg0: i32) -> (i32, i32) {
    %c0_i32 = arith.constant 0 : i32
    %c0_i32_0 = arith.constant 0 : i32
    %c0_i32_1 = arith.constant 0 : i32
    return %c0_i32, %c0_i32_0 : i32, i32
  }
  func.func @transform_4(%arg0: i32) -> (i32, i32) {
    %c0_i32 = arith.constant 0 : i32
    %c0_i32_0 = arith.constant 0 : i32
    %c0_i32_1 = arith.constant 0 : i32
    return %c0_i32, %c0_i32_0 : i32, i32
  }
  func.func @transform_5(%arg0: i32) -> (i32, i32) {
    %c0_i32 = arith.constant 0 : i32
    %c0_i32_0 = arith.constant 0 : i32
    %c0_i32_1 = arith.constant 0 : i32
    return %c0_i32, %c0_i32_0 : i32, i32
  }
  func.func @transform_6(%arg0: i32) -> (i32, i32) {
    %c0_i32 = arith.constant 0 : i32
    %c0_i32_0 = arith.constant 0 : i32
    return %arg0, %c0_i32 : i32, i32
  }
}

</mosaic_0001>

<llo_original>
// kernel: tpu_custom_call.1
$region0: #{tpu_custom_call.1}
  #allocation0 [shape = 'u32[]', space=smem, size = 0x4, offset = 0x4, fixed_abs, tag = 'smem constant byte address 0x4 - core index']
  #allocation1 [shape = 'u32[144,128]{1,0:T(1,128)}', space=vmem, size = 0x12000, scoped, tag = 'internal scratch']
  %s0 = inlined_call_operand.hbm [shape: f32[16,32], index: 0, kind: input, shape index: {}]
  %s1 = inlined_call_operand.hbm [shape: f32[8,16,32], index: 1, kind: input, shape index: {}]
  %s2 = inlined_call_operand.hbm [shape: f32[32,32], index: 2, kind: input, shape index: {}]
  %s3 = inlined_call_operand.hbm [shape: f32[32,32], index: 3, kind: input, shape index: {}]
  %s4 = inlined_call_operand.vmem [shape: f32[1,32], index: 4, kind: input, shape index: {}]
  %s5 = inlined_call_operand.vmem [shape: f32[1,32], index: 5, kind: input, shape index: {}]
  %s6 = inlined_call_operand.vmem [shape: f32[16,8], index: 6, kind: output, shape index: {}]
  %s7 = sld [smem:[#allocation0]]
  $region73: #{tpu_custom_call.1} parent=0
    _
  %s9 = ssub.s32 1, %s7
  %s10 = scalar_select 0, %s9, %s7
  $region1: #{tpu_custom_call.1} parent=0
    #allocation2 [shape = 'u8[8192]{0}', space=vmem, size = 0x2000, scoped, tag = 'input window, operand 0']
    #allocation3 [shape = 's32[2]{0}', space=sflag, size = 0x8, scoped, tag = 'scoped memory for tpu_custom_call.1']
    #allocation4 [shape = 'u8[65536]{0}', space=vmem, size = 0x10000, scoped, tag = 'input window, operand 1']
    #allocation5 [shape = 's32[2]{0}', space=sflag, size = 0x8, scoped, tag = 'scoped memory for tpu_custom_call.1']
    #allocation6 [shape = 'u8[16384]{0}', space=vmem, size = 0x4000, scoped, tag = 'input window, operand 2, single buffered']
    #allocation7 [shape = 'u8[16384]{0}', space=vmem, size = 0x4000, scoped, tag = 'input window, operand 3, single buffered']
    #allocation8 [shape = 's32[1]{0}', space=sflag, size = 0x4, scoped, tag = 'scoped memory for tpu_custom_call.1']
    %11 = vsyncpa [#allocation3], 0
    %s12 = scalar_lea.sflag [#allocation3], 1
    %13 = vsyncpa %s12, 0
    %14 = vsyncpa [#allocation5], 0
    %s15 = scalar_lea.sflag [#allocation5], 1
    %16 = vsyncpa %s15, 0
    %17 = vsyncpa [#allocation8], 0
    loop: start=0, step=1, limit=4
    $region2: #{tpu_custom_call.1} parent=1 // loop_pre_header
      _
    $region3: #{tpu_custom_call.1} parent=1 // loop_header
      %s19 = sphi 0, %s23
      %p20 = scmp.ge.s32.totalorder %s19, 4
      %s29 = sphi 0, %s31
      %s32 = sphi 0, %s29
      %s33 = sphi 0, %s32
      %s49 = sphi 0, %s33
      %s55 = sphi 0, %s57
      %s58 = sphi 0, %s55
      %s59 = sphi 0, %s58
      %s75 = sphi 0, %s59
      %s79 = sphi 0, %s79
      %s81 = sphi 0, %s79
      %s82 = sphi 0, %s81
      %s96 = sphi 0, %s82
      %s100 = sphi 0, %s100
      %s102 = sphi 0, %s100
      %s103 = sphi 0, %s102
      %s117 = sphi 0, %s103
      %s121 = sphi 0, %s121
      %s123 = sphi 0, %s121
      %s124 = sphi 0, %s123
      %s138 = sphi 0, %s124
      %s142 = sphi 0, %s142
      %s144 = sphi 0, %s142
      %s145 = sphi 0, %s144
      %s159 = sphi 0, %s145
      %s165 = sphi 0, %s167
      %s168 = sphi 0, %s165
      %s169 = sphi 0, %s168
      %s185 = sphi 0, %s169
    $region4: #{tpu_custom_call.1} parent=1 // loop_header_branch
      %22 = sbr.rel (%p20) target = $region8
    $region5: #{tpu_custom_call.1} parent=1 // loop_body
      %s24 = ssub.s32 %s19, 1
      %s25 = ssub.s32 %s19, 2
      %s26 = sadd.s32 %s19, 1
      %s27 = ssub.s32 %s19, %s26
      %p28 = scmp.eq.s32.totalorder %s27, 0
      %s30 = sadd.s32 %s29, 1
      %s31 = scalar_select %p28, %s29, %s30
      %p34 = pneg %p28
      %p35 = scmp.eq.s32.totalorder %s19, 1
      %p36 = por %p34, %p35
      %p37 = scmp.ne.s32.totalorder %s29, %s32
      %p38 = scmp.eq.s32.totalorder %s19, 0
      %p39 = por %p37, %p38
      %p40 = scmp.ne.s32.totalorder %s29, %s32
      %p41 = scmp.eq.s32.totalorder %s24, 1
      %p42 = por %p40, %p41
      %p43 = scmp.ne.s32.totalorder %s32, %s33
      %p44 = scmp.eq.s32.totalorder %s24, 0
      %p45 = por %p43, %p44
      %p46 = scmp.ne.s32.totalorder %s32, %s33
      %p47 = scmp.eq.s32.totalorder %s25, 1
      %p48 = por %p46, %p47
      %p50 = scmp.ne.s32.totalorder %s33, %s49
      %p51 = scmp.eq.s32.totalorder %s25, 0
      %p52 = por %p50, %p51
      %s53 = ssub.s32 %s19, %s26
      %p54 = scmp.eq.s32.totalorder %s53, 0
      %s56 = sadd.s32 %s55, 1
      %s57 = scalar_select %p54, %s55, %s56
      %p60 = pneg %p54
      %p61 = scmp.eq.s32.totalorder %s19, 1
      %p62 = por %p60, %p61
      %p63 = scmp.ne.s32.totalorder %s55, %s58
      %p64 = scmp.eq.s32.totalorder %s19, 0
      %p65 = por %p63, %p64
      %p66 = scmp.ne.s32.totalorder %s55, %s58
      %p67 = scmp.eq.s32.totalorder %s24, 1
      %p68 = por %p66, %p67
      %p69 = scmp.ne.s32.totalorder %s58, %s59
      %p70 = scmp.eq.s32.totalorder %s24, 0
      %p71 = por %p69, %p70
      %p72 = scmp.ne.s32.totalorder %s58, %s59
      %p73 = scmp.eq.s32.totalorder %s25, 1
      %p74 = por %p72, %p73
      %p76 = scmp.ne.s32.totalorder %s59, %s75
      %p77 = scmp.eq.s32.totalorder %s25, 0
      %p78 = por %p76, %p77
      %s80 = sadd.s32 %s79, 1
      %p83 = scmp.eq.s32.totalorder %s19, 1
      %p84 = scmp.ne.s32.totalorder %s79, %s81
      %p85 = scmp.eq.s32.totalorder %s19, 0
      %p86 = por %p84, %p85
      %p87 = scmp.ne.s32.totalorder %s79, %s81
      %p88 = scmp.eq.s32.totalorder %s24, 1
      %p89 = por %p87, %p88
      %p90 = scmp.ne.s32.totalorder %s81, %s82
      %p91 = scmp.eq.s32.totalorder %s24, 0
      %p92 = por %p90, %p91
      %p93 = scmp.ne.s32.totalorder %s81, %s82
      %p94 = scmp.eq.s32.totalorder %s25, 1
      %p95 = por %p93, %p94
      %p97 = scmp.ne.s32.totalorder %s82, %s96
      %p98 = scmp.eq.s32.totalorder %s25, 0
      %p99 = por %p97, %p98
      %s101 = sadd.s32 %s100, 1
      %p104 = scmp.eq.s32.totalorder %s19, 1
      %p105 = scmp.ne.s32.totalorder %s100, %s102
      %p106 = scmp.eq.s32.totalorder %s19, 0
      %p107 = por %p105, %p106
      %p108 = scmp.ne.s32.totalorder %s100, %s102
      %p109 = scmp.eq.s32.totalorder %s24, 1
      %p110 = por %p108, %p109
      %p111 = scmp.ne.s32.totalorder %s102, %s103
      %p112 = scmp.eq.s32.totalorder %s24, 0
      %p113 = por %p111, %p112
      %p114 = scmp.ne.s32.totalorder %s102, %s103
      %p115 = scmp.eq.s32.totalorder %s25, 1
      %p116 = por %p114, %p115
      %p118 = scmp.ne.s32.totalorder %s103, %s117
      %p119 = scmp.eq.s32.totalorder %s25, 0
      %p120 = por %p118, %p119
      %s122 = sadd.s32 %s121, 1
      %p125 = scmp.eq.s32.totalorder %s19, 1
      %p126 = scmp.ne.s32.totalorder %s121, %s123
      %p127 = scmp.eq.s32.totalorder %s19, 0
      %p128 = por %p126, %p127
      %p129 = scmp.ne.s32.totalorder %s121, %s123
      %p130 = scmp.eq.s32.totalorder %s24, 1
      %p131 = por %p129, %p130
      %p132 = scmp.ne.s32.totalorder %s123, %s124
      %p133 = scmp.eq.s32.totalorder %s24, 0
      %p134 = por %p132, %p133
      %p135 = scmp.ne.s32.totalorder %s123, %s124
      %p136 = scmp.eq.s32.totalorder %s25, 1
      %p137 = por %p135, %p136
      %p139 = scmp.ne.s32.totalorder %s124, %s138
      %p140 = scmp.eq.s32.totalorder %s25, 0
      %p141 = por %p139, %p140
      %s143 = sadd.s32 %s142, 1
      %p146 = scmp.eq.s32.totalorder %s19, 1
      %p147 = scmp.ne.s32.totalorder %s142, %s144
      %p148 = scmp.eq.s32.totalorder %s19, 0
      %p149 = por %p147, %p148
      %p150 = scmp.ne.s32.totalorder %s142, %s144
      %p151 = scmp.eq.s32.totalorder %s24, 1
      %p152 = por %p150, %p151
      %p153 = scmp.ne.s32.totalorder %s144, %s145
      %p154 = scmp.eq.s32.totalorder %s24, 0
      %p155 = por %p153, %p154
      %p156 = scmp.ne.s32.totalorder %s144, %s145
      %p157 = scmp.eq.s32.totalorder %s25, 1
      %p158 = por %p156, %p157
      %p160 = scmp.ne.s32.totalorder %s145, %s159
      %p161 = scmp.eq.s32.totalorder %s25, 0
      %p162 = por %p160, %p161
      %s163 = ssub.s32 %s19, %s26
      %p164 = scmp.eq.s32.totalorder %s163, 0
      %s166 = sadd.s32 %s165, 1
      %s167 = scalar_select %p164, %s165, %s166
      %p170 = pneg %p164
      %p171 = scmp.eq.s32.totalorder %s19, 1
      %p172 = por %p170, %p171
      %p173 = scmp.ne.s32.totalorder %s165, %s168
      %p174 = scmp.eq.s32.totalorder %s19, 0
      %p175 = por %p173, %p174
      %p176 = scmp.ne.s32.totalorder %s165, %s168
      %p177 = scmp.eq.s32.totalorder %s24, 1
      %p178 = por %p176, %p177
      %p179 = scmp.ne.s32.totalorder %s168, %s169
      %p180 = scmp.eq.s32.totalorder %s24, 0
      %p181 = por %p179, %p180
      %p182 = scmp.ne.s32.totalorder %s168, %s169
      %p183 = scmp.eq.s32.totalorder %s25, 1
      %p184 = por %p182, %p183
      %p186 = scmp.ne.s32.totalorder %s169, %s185
      %p187 = scmp.eq.s32.totalorder %s25, 0
      %p188 = por %p186, %p187
      %p189 = scmp.le.s32.totalorder 1, %s19
      %p190 = scmp.lt.s32.totalorder %s19, 3
      %p191 = pnand %p189, %p190
      %p192 = pneg %p191
      // Predicated region
      $region9: #{tpu_custom_call.1} parent=5 // pred_check
        _
      $region10: #{tpu_custom_call.1} parent=5 // pred_check_branch
        %194 = sbr.rel (%p191) target = $region12
      $region11: #{tpu_custom_call.1} parent=5 // pred_region
        %s195 = ssub.s32 %s19, 1
        // Predicated region
        $region13: #{tpu_custom_call.1} parent=11 // pred_check
          %p196 = pneg %p92
        $region14: #{tpu_custom_call.1} parent=11 // pred_check_branch
          %198 = sbr.rel (%p196) target = $region16
        $region15: #{tpu_custom_call.1} parent=11 // pred_region
          %s200 = ssub.s32 512, 512
          %201 = vsyncadd [#allocation5], %s200
          %s202 = sshll.u32 [#allocation6], 4
          %s203 = int_to_ptr.vmem [resolvable:$true] %s202
          %208 = dma.hbm_to_vmem [thread:$0]  %s2, 512, %s203, [#allocation5], 128, 128, 8
        $region16: #{tpu_custom_call.1} parent=11 // pred_fallthru
          _
        // Predicated region
        $region17: #{tpu_custom_call.1} parent=11 // pred_check
          %p209 = pneg %p113
        $region18: #{tpu_custom_call.1} parent=11 // pred_check_branch
          %211 = sbr.rel (%p209) target = $region20
        $region19: #{tpu_custom_call.1} parent=11 // pred_region
          %s213 = ssub.s32 512, 512
          %214 = vsyncadd [#allocation8], %s213
          %s215 = sshll.u32 [#allocation7], 4
          %s216 = int_to_ptr.vmem [resolvable:$true] %s215
          %221 = dma.hbm_to_vmem [thread:$0]  %s3, 512, %s216, [#allocation8], 128, 128, 8
        $region20: #{tpu_custom_call.1} parent=11 // pred_fallthru
          _
        // Predicated region
        $region21: #{tpu_custom_call.1} parent=11 // pred_check
          %p222 = pneg %p134
        $region22: #{tpu_custom_call.1} parent=11 // pred_check_branch
          %224 = sbr.rel (%p222) target = $region24
        $region23: #{tpu_custom_call.1} parent=11 // pred_region
          _
        $region24: #{tpu_custom_call.1} parent=11 // pred_fallthru
          _
        // Predicated region
        $region25: #{tpu_custom_call.1} parent=11 // pred_check
          %p225 = pneg %p155
        $region26: #{tpu_custom_call.1} parent=11 // pred_check_branch
          %227 = sbr.rel (%p225) target = $region28
        $region27: #{tpu_custom_call.1} parent=11 // pred_region
          _
        $region28: #{tpu_custom_call.1} parent=11 // pred_fallthru
          _
      $region12: #{tpu_custom_call.1} parent=5 // pred_fallthru
        _
      %p228 = scmp.lt.s32.totalorder %s19, 2
      // Predicated region
      $region29: #{tpu_custom_call.1} parent=5 // pred_check
        %p229 = pneg %p228
      $region30: #{tpu_custom_call.1} parent=5 // pred_check_branch
        %231 = sbr.rel (%p229) target = $region32
      $region31: #{tpu_custom_call.1} parent=5 // pred_region
        // Predicated region
        $region33: #{tpu_custom_call.1} parent=31 // pred_check
          %p232 = pneg %p39
        $region34: #{tpu_custom_call.1} parent=31 // pred_check_branch
          %234 = sbr.rel (%p232) target = $region36
        $region35: #{tpu_custom_call.1} parent=31 // pred_region
          %s235 = sand.u32 %s29, 1
          %s236 = scalar_lea.sflag [#allocation3], %s235
          %s237 = sand.u32 %s29, 1
          %s238 = smul.addr %s237, 8
          %s239 = scalar_lea.vmem [#allocation2], %s238
          %s241 = ssub.s32 128, 128
          %242 = vsyncadd %s236, %s241
          %s243 = smul.addr %s19, 128
          %s244 = scalar_lea.hbm %s0, %s243
          %s246 = sshll.u32 %s239, 4
          %s247 = int_to_ptr.vmem [resolvable:$true] %s246
          %249 = dma.hbm_to_vmem [thread:$0]  %s244, 128, %s247, %s236
        $region36: #{tpu_custom_call.1} parent=31 // pred_fallthru
          _
        // Predicated region
        $region37: #{tpu_custom_call.1} parent=31 // pred_check
          %p250 = pneg %p65
        $region38: #{tpu_custom_call.1} parent=31 // pred_check_branch
          %252 = sbr.rel (%p250) target = $region40
        $region39: #{tpu_custom_call.1} parent=31 // pred_region
          %s253 = sand.u32 %s19, 1
          %s254 = scalar_lea.sflag [#allocation5], %s253
          %s255 = sand.u32 %s55, 1
          %s256 = smul.addr %s255, 64
          %s257 = scalar_lea.vmem [#allocation4], %s256
          %s259 = ssub.s32 1024, 1024
          %260 = vsyncadd %s254, %s259
          %s261 = smul.addr %s19, 128
          %s262 = scalar_lea.hbm %s1, %s261
          %s263 = sshll.u32 %s257, 4
          %s264 = int_to_ptr.vmem [resolvable:$true] %s263
          %269 = dma.hbm_to_vmem [thread:$0]  %s262, 1024, %s264, %s254, 256, 128, 8
        $region40: #{tpu_custom_call.1} parent=31 // pred_fallthru
          _
      $region32: #{tpu_custom_call.1} parent=5 // pred_fallthru
        _
      %p270 = scmp.le.s32.totalorder 1, %s19
      %p271 = scmp.lt.s32.totalorder %s19, 3
      %p272 = pnand %p270, %p271
      %p273 = pneg %p272
      // Predicated region
      $region41: #{tpu_custom_call.1} parent=5 // pred_check
        _
      $region42: #{tpu_custom_call.1} parent=5 // pred_check_branch
        %275 = sbr.rel (%p272) target = $region44
      $region43: #{tpu_custom_call.1} parent=5 // pred_region
        %s276 = ssub.s32 %s19, 1
        %s277 = sand.u32 %s32, 1
        %s278 = scalar_lea.sflag [#allocation3], %s277
        %s279 = sand.u32 %s32, 1
        %s280 = smul.addr %s279, 8
        %s281 = scalar_lea.vmem [#allocation2], %s280
        // Predicated region
        $region45: #{tpu_custom_call.1} parent=43 // pred_check
          %p282 = pneg %p45
        $region46: #{tpu_custom_call.1} parent=43 // pred_check_branch
          %284 = sbr.rel (%p282) target = $region48
        $region47: #{tpu_custom_call.1} parent=43 // pred_region
          %285 = dma.done %s278, 128
        $region48: #{tpu_custom_call.1} parent=43 // pred_fallthru
          _
        %s286 = sand.u32 %s24, 1
        %s287 = scalar_lea.sflag [#allocation5], %s286
        %s288 = sand.u32 %s58, 1
        %s289 = smul.addr %s288, 64
        %s290 = scalar_lea.vmem [#allocation4], %s289
        // Predicated region
        $region49: #{tpu_custom_call.1} parent=43 // pred_check
          %p291 = pneg %p71
        $region50: #{tpu_custom_call.1} parent=43 // pred_check_branch
          %293 = sbr.rel (%p291) target = $region52
        $region51: #{tpu_custom_call.1} parent=43 // pred_region
          %294 = dma.done %s287, 1024
        $region52: #{tpu_custom_call.1} parent=43 // pred_fallthru
          _
        // Predicated region
        $region53: #{tpu_custom_call.1} parent=43 // pred_check
          %p295 = pneg %p92
        $region54: #{tpu_custom_call.1} parent=43 // pred_check_branch
          %297 = sbr.rel (%p295) target = $region56
        $region55: #{tpu_custom_call.1} parent=43 // pred_region
          %298 = dma.done [#allocation5], 512
        $region56: #{tpu_custom_call.1} parent=43 // pred_fallthru
          _
        // Predicated region
        $region57: #{tpu_custom_call.1} parent=43 // pred_check
          %p299 = pneg %p113
        $region58: #{tpu_custom_call.1} parent=43 // pred_check_branch
          %301 = sbr.rel (%p299) target = $region60
        $region59: #{tpu_custom_call.1} parent=43 // pred_region
          %302 = dma.done [#allocation8], 512
        $region60: #{tpu_custom_call.1} parent=43 // pred_fallthru
          _
        %s303 = sand.u32 %s32, 1
        %s304 = scalar_lea.sflag [#allocation3], %s303
        %s305 = sand.u32 %s32, 1
        %s306 = smul.addr %s305, 8
        %s307 = scalar_lea.vmem [#allocation2], %s306
        %p308 = pneg %p45
        %p309 = pneg %p42
        %s310 = sand.u32 %s24, 1
        %s311 = scalar_lea.sflag [#allocation5], %s310
        %s312 = sand.u32 %s58, 1
        %s313 = smul.addr %s312, 64
        %s314 = scalar_lea.vmem [#allocation4], %s313
        %p315 = pneg %p71
        %p316 = pneg %p68
        %p317 = pneg %p92
        %p318 = pneg %p89
        %p319 = pneg %p113
        %p320 = pneg %p110
        %p321 = pneg %p134
        %p322 = pneg %p131
        %p323 = pneg %p155
        %p324 = pneg %p152
        %p325 = pneg %p181
        %p326 = pneg %p178
        %p327 = scmp.lt.s32.totalorder %s24, 1
        %s328 = scalar_select %p327, %s24, 1
        %s329 = smul.addr %s328, 8
        %s330 = scalar_lea.vmem %s6, %s329
        %p331 = scmp.lt.s32.totalorder %s24, 1
        %s332 = scalar_select %p331, %s24, 1
        %s333 = smul.addr %s332, 8
        %s334 = scalar_lea.vmem %s6, %s333
        %v335 = vld [vmem:[%s281] sm:$0xff]
        %v336 = vld [vmem:[#allocation6] sm:$0xff]
        %v337 = vld [vmem:[#allocation6 + $0x8] sm:$0xff]
        %v338 = vld [vmem:[#allocation6 + $0x10] sm:$0xff]
        %v339 = vld [vmem:[#allocation6 + $0x18] sm:$0xff]
        %vm340 = vcmask 261120
        %v342 = vsel %vm340, %v335, 0
        %344 = vmatprep.subr.mxu0 0.0
        %345 = vmatpush1.msra.mxu0 0.0
        %346 = vmatprep.subr.mxu0 0.0
        %347 = vmatpush1.msra.mxu0 0.0
        %348 = vmatprep.subr.mxu0 0.0
        %349 = vmatpush1.msra.mxu0 0.0
        %350 = vmatprep.subr.mxu0 0.0
        %351 = vmatpush1.msra.mxu0 0.0
        %352 = vmatprep.subr.mxu0 0.0
        %353 = vmatpush1.msra.mxu0 0.0
        %354 = vmatprep.subr.mxu0 0.0
        %355 = vmatpush1.msra.mxu0 0.0
        %356 = vmatprep.subr.mxu0 0.0
        %357 = vmatpush1.msra.mxu0 0.0
        %358 = vmatprep.subr.mxu0 0.0
        %359 = vmatpush1.msra.mxu0 0.0
        %360 = vmatprep.subr.mxu0 0.0
        %361 = vmatpush1.msra.mxu0 0.0
        %362 = vmatprep.subr.mxu0 0.0
        %363 = vmatpush1.msra.mxu0 0.0
        %364 = vmatprep.subr.mxu0 0.0
        %365 = vmatpush1.msra.mxu0 0.0
        %366 = vmatprep.subr.mxu0 0.0
        %367 = vmatpush1.msra.mxu0 0.0
        %368 = vmatprep.subr.mxu0 0.0
        %369 = vmatpush1.msra.mxu0 %v339
        %370 = vmatprep.subr.mxu0 0.0
        %371 = vmatpush1.msra.mxu0 %v338
        %372 = vmatprep.subr.mxu0 0.0
        %373 = vmatpush1.msra.mxu0 %v337
        %374 = vmatprep.subr.mxu0 0.0
        %375 = vmatpush1.msra.mxu0 %v336
        %376 = vmatprep.subr.mxu0 0.0
        %377 = vmatpush2.msra.mxu0 0.0
        %378 = vmatprep.subr.mxu0 0.0
        %379 = vmatpush2.msra.mxu0 0.0
        %380 = vmatprep.subr.mxu0 0.0
        %381 = vmatpush2.msra.mxu0 0.0
        %382 = vmatprep.subr.mxu0 0.0
        %383 = vmatpush2.msra.mxu0 0.0
        %384 = vmatprep.subr.mxu0 0.0
        %385 = vmatpush2.msra.mxu0 0.0
        %386 = vmatprep.subr.mxu0 0.0
        %387 = vmatpush2.msra.mxu0 0.0
        %388 = vmatprep.subr.mxu0 0.0
        %389 = vmatpush2.msra.mxu0 0.0
        %390 = vmatprep.subr.mxu0 0.0
        %391 = vmatpush2.msra.mxu0 0.0
        %392 = vmatprep.subr.mxu0 0.0
        %393 = vmatpush2.msra.mxu0 0.0
        %394 = vmatprep.subr.mxu0 0.0
        %395 = vmatpush2.msra.mxu0 0.0
        %396 = vmatprep.subr.mxu0 0.0
        %397 = vmatpush2.msra.mxu0 0.0
        %398 = vmatprep.subr.mxu0 0.0
        %399 = vmatpush2.msra.mxu0 0.0
        %400 = vmatprep.subr.mxu0 0.0
        %401 = vmatpush2.msra.mxu0 0.0
        %402 = vmatprep.subr.mxu0 0.0
        %403 = vmatpush2.msra.mxu0 0.0
        %404 = vmatprep.subr.mxu0 0.0
        %405 = vmatpush2.msra.mxu0 0.0
        %406 = vmatprep.subr.mxu0 0.0
        %407 = vmatpush2.msra.mxu0 0.0
        %408 = vmatprep.mubr.f32.mxu0 0.0
        %409 = vmatmul.mubr.f32.gmra.mxu0 %v342
        %v410 = vpop.f32.mrf.mxu0
        %v411 = vadd.f32 0.0, %v410
        %v412 = vpop.f32.mrf.mxu0
        %413 = vdwg.mxu0
        %v414 = vld [vmem:[%s290] sm:$0xff]
        %v415 = vld [vmem:[%s290 + $0x8] sm:$0xff]
        %v416 = vld [vmem:[%s290 + $0x10] sm:$0xff]
        %v417 = vld [vmem:[%s290 + $0x18] sm:$0xff]
        %v418 = vld [vmem:[%s290 + $0x20] sm:$0xff]
        %v419 = vld [vmem:[%s290 + $0x28] sm:$0xff]
        %v420 = vld [vmem:[%s290 + $0x30] sm:$0xff]
        %v421 = vld [vmem:[%s290 + $0x38] sm:$0xff]
        %v422 = vld [vmem:[#allocation7] sm:$0xff]
        %v423 = vld [vmem:[#allocation7 + $0x8] sm:$0xff]
        %v424 = vld [vmem:[#allocation7 + $0x10] sm:$0xff]
        %v425 = vld [vmem:[#allocation7 + $0x18] sm:$0xff]
        %v427 = vsel %vm340, %v414, 0
        %v430 = vsel %vm340, %v415, 0
        %v433 = vsel %vm340, %v416, 0
        %v436 = vsel %vm340, %v417, 0
        %v439 = vsel %vm340, %v418, 0
        %v442 = vsel %vm340, %v419, 0
        %v445 = vsel %vm340, %v420, 0
        %v448 = vsel %vm340, %v421, 0
        %450 = vmatprep.subr.mxu0 0.0
        %451 = vmatpush1.msra.mxu0 0.0
        %452 = vmatprep.subr.mxu0 0.0
        %453 = vmatpush1.msra.mxu0 0.0
        %454 = vmatprep.subr.mxu0 0.0
        %455 = vmatpush1.msra.mxu0 0.0
        %456 = vmatprep.subr.mxu0 0.0
        %457 = vmatpush1.msra.mxu0 0.0
        %458 = vmatprep.subr.mxu0 0.0
        %459 = vmatpush1.msra.mxu0 0.0
        %460 = vmatprep.subr.mxu0 0.0
        %461 = vmatpush1.msra.mxu0 0.0
        %462 = vmatprep.subr.mxu0 0.0
        %463 = vmatpush1.msra.mxu0 0.0
        %464 = vmatprep.subr.mxu0 0.0
        %465 = vmatpush1.msra.mxu0 0.0
        %466 = vmatprep.subr.mxu0 0.0
        %467 = vmatpush1.msra.mxu0 0.0
        %468 = vmatprep.subr.mxu0 0.0
        %469 = vmatpush1.msra.mxu0 0.0
        %470 = vmatprep.subr.mxu0 0.0
        %471 = vmatpush1.msra.mxu0 0.0
        %472 = vmatprep.subr.mxu0 0.0
        %473 = vmatpush1.msra.mxu0 0.0
        %474 = vmatprep.subr.mxu0 0.0
        %475 = vmatpush1.msra.mxu0 %v425
        %476 = vmatprep.subr.mxu0 0.0
        %477 = vmatpush1.msra.mxu0 %v424
        %478 = vmatprep.subr.mxu0 0.0
        %479 = vmatpush1.msra.mxu0 %v423
        %480 = vmatprep.subr.mxu0 0.0
        %481 = vmatpush1.msra.mxu0 %v422
        %482 = vmatprep.subr.mxu0 0.0
        %483 = vmatpush2.msra.mxu0 0.0
        %484 = vmatprep.subr.mxu0 0.0
        %485 = vmatpush2.msra.mxu0 0.0
        %486 = vmatprep.subr.mxu0 0.0
        %487 = vmatpush2.msra.mxu0 0.0
        %488 = vmatprep.subr.mxu0 0.0
        %489 = vmatpush2.msra.mxu0 0.0
        %490 = vmatprep.subr.mxu0 0.0
        %491 = vmatpush2.msra.mxu0 0.0
        %492 = vmatprep.subr.mxu0 0.0
        %493 = vmatpush2.msra.mxu0 0.0
        %494 = vmatprep.subr.mxu0 0.0
        %495 = vmatpush2.msra.mxu0 0.0
        %496 = vmatprep.subr.mxu0 0.0
        %497 = vmatpush2.msra.mxu0 0.0
        %498 = vmatprep.subr.mxu0 0.0
        %499 = vmatpush2.msra.mxu0 0.0
        %500 = vmatprep.subr.mxu0 0.0
        %501 = vmatpush2.msra.mxu0 0.0
        %502 = vmatprep.subr.mxu0 0.0
        %503 = vmatpush2.msra.mxu0 0.0
        %504 = vmatprep.subr.mxu0 0.0
        %505 = vmatpush2.msra.mxu0 0.0
        %506 = vmatprep.subr.mxu0 0.0
        %507 = vmatpush2.msra.mxu0 0.0
        %508 = vmatprep.subr.mxu0 0.0
        %509 = vmatpush2.msra.mxu0 0.0
        %510 = vmatprep.subr.mxu0 0.0
        %511 = vmatpush2.msra.mxu0 0.0
        %512 = vmatprep.subr.mxu0 0.0
        %513 = vmatpush2.msra.mxu0 0.0
        %514 = vmatprep.mubr.f32.mxu0 0.0
        %515 = vmatmul.mubr.f32.gmra.mxu0 %v427
        %v516 = vpop.f32.mrf.mxu0
        %v517 = vadd.f32 0.0, %v516
        %v518 = vpop.f32.mrf.mxu0
        %519 = vmatprep.mubr.f32.mxu0 0.0
        %520 = vmatmul.mubr.f32.gmra.mxu0 %v430
        %v521 = vpop.f32.mrf.mxu0
        %v522 = vadd.f32 0.0, %v521
        %v523 = vpop.f32.mrf.mxu0
        %524 = vmatprep.mubr.f32.mxu0 0.0
        %525 = vmatmul.mubr.f32.gmra.mxu0 %v433
        %v526 = vpop.f32.mrf.mxu0
        %v527 = vadd.f32 0.0, %v526
        %v528 = vpop.f32.mrf.mxu0
        %529 = vmatprep.mubr.f32.mxu0 0.0
        %530 = vmatmul.mubr.f32.gmra.mxu0 %v436
        %v531 = vpop.f32.mrf.mxu0
        %v532 = vadd.f32 0.0, %v531
        %v533 = vpop.f32.mrf.mxu0
        %534 = vmatprep.mubr.f32.mxu0 0.0
        %535 = vmatmul.mubr.f32.gmra.mxu0 %v439
        %v536 = vpop.f32.mrf.mxu0
        %v537 = vadd.f32 0.0, %v536
        %v538 = vpop.f32.mrf.mxu0
        %539 = vmatprep.mubr.f32.mxu0 0.0
        %540 = vmatmul.mubr.f32.gmra.mxu0 %v442
        %v541 = vpop.f32.mrf.mxu0
        %v542 = vadd.f32 0.0, %v541
        %v543 = vpop.f32.mrf.mxu0
        %544 = vmatprep.mubr.f32.mxu0 0.0
        %545 = vmatmul.mubr.f32.gmra.mxu0 %v445
        %v546 = vpop.f32.mrf.mxu0
        %v547 = vadd.f32 0.0, %v546
        %v548 = vpop.f32.mrf.mxu0
        %549 = vmatprep.mubr.f32.mxu0 0.0
        %550 = vmatmul.mubr.f32.gmra.mxu0 %v448
        %v551 = vpop.f32.mrf.mxu0
        %v552 = vadd.f32 0.0, %v551
        %v553 = vpop.f32.mrf.mxu0
        %554 = vdwg.mxu0
        %v555 = vld [vmem:[%s4] sm:$0x1]
        %v556 = vadd.f32 %v517, %v411
        %v557 = vadd.f32 %v522, %v411
        %v558 = vadd.f32 %v527, %v411
        %v559 = vadd.f32 %v532, %v411
        %v560 = vadd.f32 %v537, %v411
        %v561 = vadd.f32 %v542, %v411
        %v562 = vadd.f32 %v547, %v411
        %v563 = vadd.f32 %v552, %v411
        %v565 = vlaneseq
        %v566 = vshrl.u32 %v565, 7
        %v567 = vsub.s32 0, %v566
        %v568 = vrot.slane %v555, %v567
        %v570 = vadd.f32 %v556, %v568
        %v571 = vadd.f32 %v557, %v568
        %v572 = vadd.f32 %v558, %v568
        %v573 = vadd.f32 %v559, %v568
        %v574 = vadd.f32 %v560, %v568
        %v575 = vadd.f32 %v561, %v568
        %v576 = vadd.f32 %v562, %v568
        %v577 = vadd.f32 %v563, %v568
        %v578 = vtanh.pop %v570
        %v579 = vtanh.pop %v571
        %v580 = vtanh.pop %v572
        %v581 = vtanh.pop %v573
        %v582 = vtanh.pop %v574
        %v583 = vtanh.pop %v575
        %v584 = vtanh.pop %v576
        %v585 = vtanh.pop %v577
        %v586 = vld [vmem:[%s5] sm:$0x1]
        %v588 = vlaneseq
        %v589 = vshrl.u32 %v588, 7
        %v590 = vsub.s32 0, %v589
        %v591 = vrot.slane %v586, %v590
        %v593 = vmul.f32 %v578, %v591
        %v594 = vmul.f32 %v579, %v591
        %v595 = vmul.f32 %v580, %v591
        %v596 = vmul.f32 %v581, %v591
        %v597 = vmul.f32 %v582, %v591
        %v598 = vmul.f32 %v583, %v591
        %v599 = vmul.f32 %v584, %v591
        %v600 = vmul.f32 %v585, %v591
        %v601 = vsel %vm340, %v593, 0.0
        %602 = vadd.xlane.f32.xlu0 %v601
        %v603 = vpop.xlane.xlu0 %602
        %v604 = vsel %vm340, %v594, 0.0
        %605 = vadd.xlane.f32.xlu0 %v604
        %v606 = vpop.xlane.xlu0 %605
        %v607 = vsel %vm340, %v595, 0.0
        %608 = vadd.xlane.f32.xlu0 %v607
        %v609 = vpop.xlane.xlu0 %608
        %v610 = vsel %vm340, %v596, 0.0
        %611 = vadd.xlane.f32.xlu0 %v610
        %v612 = vpop.xlane.xlu0 %611
        %v613 = vsel %vm340, %v597, 0.0
        %614 = vadd.xlane.f32.xlu0 %v613
        %v615 = vpop.xlane.xlu0 %614
        %v616 = vsel %vm340, %v598, 0.0
        %617 = vadd.xlane.f32.xlu0 %v616
        %v618 = vpop.xlane.xlu0 %617
        %v619 = vsel %vm340, %v599, 0.0
        %620 = vadd.xlane.f32.xlu0 %v619
        %v621 = vpop.xlane.xlu0 %620
        %v622 = vsel %vm340, %v600, 0.0
        %623 = vadd.xlane.f32.xlu0 %v622
        %v624 = vpop.xlane.xlu0 %623
        %v633 = vlaneseq
        %v634 = vand.u32 %v633, 127
        %v635 = vlaneseq
        %v636 = vshrl.u32 %v635, 7
        %v637 = vsub.s32 %v634, %v636
        %v638 = vrot.slane %v603, %v637
        %v639 = vlaneseq
        %v640 = vshrl.u32 %v639, 7
        %v641 = vsub.s32 %v634, %v640
        %v642 = vrot.slane %v606, %v641
        %v643 = vlaneseq
        %v644 = vshrl.u32 %v643, 7
        %v645 = vsub.s32 %v634, %v644
        %v646 = vrot.slane %v609, %v645
        %v647 = vlaneseq
        %v648 = vshrl.u32 %v647, 7
        %v649 = vsub.s32 %v634, %v648
        %v650 = vrot.slane %v612, %v649
        %v651 = vlaneseq
        %v652 = vshrl.u32 %v651, 7
        %v653 = vsub.s32 %v634, %v652
        %v654 = vrot.slane %v615, %v653
        %v655 = vlaneseq
        %v656 = vshrl.u32 %v655, 7
        %v657 = vsub.s32 %v634, %v656
        %v658 = vrot.slane %v618, %v657
        %v659 = vlaneseq
        %v660 = vshrl.u32 %v659, 7
        %v661 = vsub.s32 %v634, %v660
        %v662 = vrot.slane %v621, %v661
        %v663 = vlaneseq
        %v664 = vshrl.u32 %v663, 7
        %v665 = vsub.s32 %v634, %v664
        %v666 = vrot.slane %v624, %v665
        %vm667 = vcmask 1041409
        %v668 = vsel %vm667, %v642, %v638
        %vm669 = vcmask 1042434
        %v670 = vsel %vm669, %v646, %v668
        %vm671 = vcmask 1043459
        %v672 = vsel %vm671, %v650, %v670
        %vm673 = vcmask 1044484
        %v674 = vsel %vm673, %v654, %v672
        %vm675 = vcmask 1045509
        %v676 = vsel %vm675, %v658, %v674
        %vm677 = vcmask 1046534
        %v678 = vsel %vm677, %v662, %v676
        %vm679 = vcmask 1047559
        %v680 = vsel %vm679, %v666, %v678
        %682 = vxpose.xlu0.b32.start [1/16] %v680, 128
        %683 = vxpose.xlu0.b32.cont [2/16] 0.0, 128
        %684 = vxpose.xlu0.b32.cont [3/16] 0.0, 128
        %685 = vxpose.xlu0.b32.cont [4/16] 0.0, 128
        %686 = vxpose.xlu0.b32.cont [5/16] 0.0, 128
        %687 = vxpose.xlu0.b32.cont [6/16] 0.0, 128
        %688 = vxpose.xlu0.b32.cont [7/16] 0.0, 128
        %689 = vxpose.xlu0.b32.cont [8/16] 0.0, 128
        %690 = vxpose.xlu0.b32.cont [9/16] 0.0, 128
        %691 = vxpose.xlu0.b32.cont [10/16] 0.0, 128
        %692 = vxpose.xlu0.b32.cont [11/16] 0.0, 128
        %693 = vxpose.xlu0.b32.cont [12/16] 0.0, 128
        %694 = vxpose.xlu0.b32.cont [13/16] 0.0, 128
        %695 = vxpose.xlu0.b32.cont [14/16] 0.0, 128
        %696 = vxpose.xlu0.b32.cont [15/16] 0.0, 128
        %697 = vxpose.xlu0.b32.end [16/16] 0.0, 128
        %v698 = vpop.trf.xlu0
        %v699 = vpop.trf.xlu0
        %v700 = vpop.trf.xlu0
        %v701 = vpop.trf.xlu0
        %v702 = vpop.trf.xlu0
        %v703 = vpop.trf.xlu0
        %v704 = vpop.trf.xlu0
        %v705 = vpop.trf.xlu0
        %v706 = vpop.trf.xlu0
        %v707 = vpop.trf.xlu0
        %v708 = vpop.trf.xlu0
        %v709 = vpop.trf.xlu0
        %v710 = vpop.trf.xlu0
        %v711 = vpop.trf.xlu0
        %v712 = vpop.trf.xlu0
        %v713 = vpop.trf.xlu0
        %vm714 = vcmask 64512
        %v715 = vsel %vm714, %v698, -inf
        %716 = vmax.xlane.f32.xlu0 %v715
        %v717 = vpop.xlane.xlu0 %716
        %v718 = vsub.f32 %v698, %v717
        %v719 = vmul.f32 %v718, 1.442695
        %v720 = vpow.pop %v719
        %v721 = vsel %vm714, %v720, 0.0
        %722 = vadd.xlane.f32.xlu0 %v721
        %v723 = vpop.xlane.xlu0 %722
        %v724 = vrcp.pop %v723
        %v725 = vmul.f32 %v720, %v724
        %726 = vst.msk [vmem:[%s334] sm:$0xff] %vm714, %v725
        %p727 = scmp.lt.s32.totalorder %s24, 1
        %s728 = scalar_select %p727, %s24, 1
        %s729 = smul.addr %s728, 8
        %s730 = scalar_lea.vmem %s6, %s729
        // Predicated region
        $region61: #{tpu_custom_call.1} parent=43 // pred_check
          %p731 = pneg %p178
        $region62: #{tpu_custom_call.1} parent=43 // pred_check_branch
          %733 = sbr.rel (%p731) target = $region64
        $region63: #{tpu_custom_call.1} parent=43 // pred_region
          _
        $region64: #{tpu_custom_call.1} parent=43 // pred_fallthru
          _
      $region44: #{tpu_custom_call.1} parent=5 // pred_fallthru
        _
      %p734 = scmp.le.s32.totalorder 2, %s19
      // Predicated region
      $region65: #{tpu_custom_call.1} parent=5 // pred_check
        %p735 = pneg %p734
      $region66: #{tpu_custom_call.1} parent=5 // pred_check_branch
        %737 = sbr.rel (%p735) target = $region68
      $region67: #{tpu_custom_call.1} parent=5 // pred_region
        %s738 = ssub.s32 %s19, 2
        // Predicated region
        $region69: #{tpu_custom_call.1} parent=67 // pred_check
          %p739 = pneg %p184
        $region70: #{tpu_custom_call.1} parent=67 // pred_check_branch
          %741 = sbr.rel (%p739) target = $region72
        $region71: #{tpu_custom_call.1} parent=67 // pred_region
          %p742 = scmp.lt.s32.totalorder %s25, 1
          %s743 = scalar_select %p742, %s25, 1
          %s744 = smul.addr %s743, 8
          %s745 = scalar_lea.vmem %s6, %s744
        $region72: #{tpu_custom_call.1} parent=67 // pred_fallthru
          _
      $region68: #{tpu_custom_call.1} parent=5 // pred_fallthru
        _
    $region6: #{tpu_custom_call.1} parent=1 // loop_footer
      %s23 = sadd.s32 1, %s19
    $region7: #{tpu_custom_call.1} parent=1 // loop_footer_branch
      %18 = sbr.rel target = $region3
    $region8: #{tpu_custom_call.1} parent=1 // loop_exit
      _
    %746 = vsyncpa [#allocation3], 1
    %s747 = scalar_lea.sflag [#allocation3], 1
    %748 = vsyncpa %s747, 1
    %749 = vsyncpa [#allocation5], 1
    %s750 = scalar_lea.sflag [#allocation5], 1
    %751 = vsyncpa %s750, 1
    %752 = vsyncpa [#allocation8], 1

</llo_original>
